<compile_context>
chip_gen: v5e
topology: v5e:2x2
jax: 0.10.0
libtpu: 0.0.40
codegen_flags: <defaults>
</compile_context>

<pallas_src>
import functools

import numpy as np
import jax
import jax.numpy as jnp
from jax.experimental import pallas as pl
from jax.experimental.pallas import tpu as pltpu


# Re-anchor the double-angle recurrence with a direct sin/cos every 2 octaves:
# at most one recurrence step per band keeps the error ~1e-6 (guaranteed inside
# the 1e-5 tolerance) while still halving the transcendental work.  Use 3 for a
# further cut (~3e-6 error) if v7x throughput matters more than tightness.
ANCHOR_EVERY = 2
_VMEM_STEP_BUDGET = 28 * 1024 * 1024   # double-buffered in+out tile per grid step


def _round_up(n: int, m: int) -> int:
    return ((n + m - 1) // m) * m


def _freq_bands(num_freqs: int, log_sampling: bool):
    if log_sampling:
        bands = 2.0 ** np.linspace(0.0, num_freqs - 1, num_freqs)
    else:
        bands = np.linspace(1.0, 2.0 ** (num_freqs - 1), num_freqs)
    return tuple(float(f) for f in bands)


def _encode_terms(x, freq_bands, include_input, use_recurrence):
    """Terms in PyTorch concat order: [x?, sin f0, cos f0, sin f1, cos f1, ...].

    x is float32.  When each band is exactly double the previous one,
    non-anchor octaves are derived with the double-angle recurrence instead of
    a full sin/cos polynomial expansion (the dominant VALU cost).
    """
    terms = [x] if include_input else []
    s = c = None
    for k, f in enumerate(freq_bands):
        if use_recurrence and k > 0 and (k % ANCHOR_EVERY != 0):
            s, c = 2.0 * s * c, 1.0 - 2.0 * s * s      # sin/cos of doubled angle
        else:
            xf = x * f
            s, c = jnp.sin(xf), jnp.cos(xf)
        terms.append(s)
        terms.append(c)
    return terms


def _flat_kernel(x_ref, o_ref, *, freq_bands, include_input, use_recurrence):
    """Lane-dense hot path: x_ref (bR, L) -> o_ref (T, bR, L).

    Every store is a full (bR, L) tile (L % 128 == 0) -> unmasked vst.
    Compute is done in f32 regardless of the input dtype; cast on store.
    """
    x = x_ref[...].astype(jnp.float32)
    terms = _encode_terms(x, freq_bands, include_input, use_recurrence)
    for t, v in enumerate(terms):
        o_ref[t] = v.astype(o_ref.dtype)


def _fused_kernel(x_ref, o_ref, *, freq_bands, include_input, use_recurrence):
    """Aligned-D path (D % 128 == 0): x_ref (bB, D) -> o_ref (bB, T*D).

    The PyTorch interleave is produced directly by 128-aligned, lane-dense
    column stores, so no post-kernel relayout is needed at all.
    """
    x = x_ref[...].astype(jnp.float32)
    D = x_ref.shape[1]
    terms = _encode_terms(x, freq_bands, include_input, use_recurrence)
    for t, v in enumerate(terms):
        o_ref[:, t * D:(t + 1) * D] = v.astype(o_ref.dtype)


def _shrink_for_grid_and_vmem(block, unit, total_rows, bytes_per_row):
    """Halve the row block until (a) the 1-D grid has >= 2 steps when there is
    enough work (so the "parallel" axis uses both v7x TensorCores) and (b) the
    double-buffered per-step tile stays under the VMEM budget."""
    while block > unit and pl.cdiv(total_rows, block) < 2:
        block = _round_up(max(unit, block // 2), unit)
    while block > unit and 2 * block * bytes_per_row > _VMEM_STEP_BUDGET:
        block = _round_up(max(unit, block // 2), unit)
    return block


@functools.partial(
    jax.jit,
    static_argnames=("num_freqs", "include_input", "log_sampling",
                     "lane_width", "block_rows", "out_dtype", "layout"),
)
def positional_encoding(x, num_freqs=6, include_input=True, log_sampling=True,
                        lane_width=512, block_rows=256, out_dtype=None,
                        layout="torch"):
    """x: [B, D] -> [B, D * (include_input + 2*num_freqs)] (layout="torch").

    layout="native" returns the kernel-native (T, B, D) with no relayout; a
    downstream MLP can absorb the permutation by permuting its first weight
    matrix once at init.
    """
    if layout not in ("torch", "native"):
        raise ValueError(f"unknown layout: {layout!r}")
    B, D = x.shape
    freq_bands = _freq_bands(num_freqs, log_sampling)
    # Recurrence is valid whenever every band is exactly double the previous
    # one (always true for log_sampling=True; checked explicitly for safety).
    use_rec = all(freq_bands[k] == 2.0 * freq_bands[k - 1]
                  for k in range(1, len(freq_bands)))
    T = int(include_input) + 2 * num_freqs
    in_dt = jnp.dtype(x.dtype)
    out_dt = jnp.dtype(out_dtype) if out_dtype is not None else in_dt
    # Min sublane multiple for the narrowest dtype touched: (8,128) f32,
    # (16,128) bf16, (32,128) fp8.
    sub = max(8, 32 // in_dt.itemsize, 32 // out_dt.itemsize)
    N = B * D

    n_direct = sum(1 for k in range(num_freqs)
                   if not (use_rec and k > 0 and k % ANCHOR_EVERY != 0))
    cost = pl.CostEstimate(
        flops=N * (1 + 5 * num_freqs),
        transcendentals=2 * n_direct * N,
        bytes_accessed=N * in_dt.itemsize + N * T * out_dt.itemsize,
    )
    cparams = pltpu.CompilerParams(
        dimension_semantics=("parallel",),   # row blocks shard across v7x's 2 TCs
        vmem_limit_bytes=32 * 1024 * 1024,
    )

    # ---- Fused path: D already 128-lane aligned -> write the PyTorch layout
    # directly from the kernel (no post-kernel relayout).
    if layout == "torch" and D % 128 == 0:
        bB = _round_up(max(sub, min(int(block_rows), B)), sub)
        bB = _shrink_for_grid_and_vmem(
            bB, sub, B, D * (in_dt.itemsize + T * out_dt.itemsize))
        B_pad = _round_up(B, bB)
        x_p = x if B_pad == B else jnp.pad(x, ((0, B_pad - B), (0, 0)))
        kernel = functools.partial(_fused_kernel, freq_bands=freq_bands,
                                   include_input=include_input,
                                   use_recurrence=use_rec)
        out = pl.pallas_call(
            kernel,
            out_shape=jax.ShapeDtypeStruct((B_pad, T * D), out_dt),
            grid_spec=pl.GridSpec(
                grid=(B_pad // bB,),
                in_specs=[pl.BlockSpec((bB, D), lambda i: (i, 0))],
                out_specs=pl.BlockSpec((bB, T * D), lambda i: (i, 0)),
            ),
            compiler_params=cparams,
            cost_estimate=cost,
        )(x_p)
        return out if B_pad == B else out[:B]

    # ---- General path: flatten to a lane-dense (rows, L) slab.
    # Adaptive lane width so tiny inputs don't compute a mostly-padded slab.
    L = max(128, min(_round_up(int(lane_width), 128),
                     _round_up(pl.cdiv(N, sub), 128)))
    R = pl.cdiv(N, L)
    bR = _round_up(max(sub, min(int(block_rows), R)), sub)
    bR = _shrink_for_grid_and_vmem(
        bR, sub, R, L * (in_dt.itemsize + T * out_dt.itemsize))
    R_pad = _round_up(R, bR)
    N_pad = R_pad * L

    x_flat = x.reshape(-1)
    if N_pad != N:                       # skip the pad copy when exact
        x_flat = jnp.pad(x_flat, (0, N_pad - N))
    x_flat = x_flat.reshape(R_pad, L)

    kernel = functools.partial(_flat_kernel, freq_bands=freq_bands,
                               include_input=include_input,
                               use_recurrence=use_rec)
    out_terms = pl.pallas_call(
        kernel,
        out_shape=jax.ShapeDtypeStruct((T, R_pad, L), out_dt),
        grid_spec=pl.GridSpec(
            grid=(R_pad // bR,),
            in_specs=[pl.BlockSpec((bR, L), lambda i: (i, 0))],
            out_specs=pl.BlockSpec((T, bR, L), lambda i: (0, i, 0)),
        ),
        compiler_params=cparams,
        cost_estimate=cost,
    )(x_flat)

    out_tbd = out_terms.reshape(T, N_pad)[:, :N].reshape(T, B, D)
    if layout == "native":
        return out_tbd
    # PyTorch concat order.  Under jit the pad/slice/reshape fold away and this
    # becomes a single relayout copy — unavoidable for tiny non-128-aligned D,
    # since out[b, t*D + d] interleaves terms at D-element granularity.
    # TODO(synk): consumers that can permute their first weight matrix should
    # use layout="native" so even this one copy disappears.
    return out_tbd.transpose(1, 0, 2).reshape(B, T * D)


def positional_encoding_ref(x, num_freqs=6, include_input=True, log_sampling=True):
    """Pure-JAX reference mirroring the PyTorch forward."""
    bands = _freq_bands(num_freqs, log_sampling)
    out = [x] if include_input else []
    for f in bands:
        out.append(jnp.sin(x * f))
        out.append(jnp.cos(x * f))
    return jnp.concatenate(out, axis=-1)


if __name__ == "__main__":
    key = jax.random.PRNGKey(0)

    # 1) Module-sized smoke test ([B, D_in], default config, recurrence path).
    B, D_in, K = 16, 4, 6
    x = jax.random.normal(key, (B, D_in), dtype=jnp.float32)
    out = jax.block_until_ready(positional_encoding(x, num_freqs=K))
    ref = positional_encoding_ref(x, num_freqs=K)
    assert out.shape == (B, D_in * (1 + 2 * K)), out.shape
    assert jnp.allclose(out, ref, atol=1e-5, rtol=1e-5)

    # 1b) Kernel-native layout (no relayout pass): same data in (T, B, D).
    out_nat = jax.block_until_ready(
        positional_encoding(x, num_freqs=K, layout="native"))
    assert out_nat.shape == (1 + 2 * K, B, D_in), out_nat.shape
    assert jnp.allclose(out_nat.transpose(1, 0, 2).reshape(B, -1), ref,
                        atol=1e-5, rtol=1e-5)

    # 2) Padding path + include_input=False + linear bands (direct sin/cos).
    x2 = jax.random.normal(jax.random.PRNGKey(1), (100, 3), dtype=jnp.float32)
    out2 = jax.block_until_ready(positional_encoding(
        x2, num_freqs=4, include_input=False, log_sampling=False,
        lane_width=128, block_rows=8))
    ref2 = positional_encoding_ref(x2, num_freqs=4, include_input=False,
                                   log_sampling=False)
    assert out2.shape == (100, 3 * 2 * 4), out2.shape
    assert jnp.allclose(out2, ref2, atol=1e-5, rtol=1e-5)

    # 3) Multi-step grid (>= 2 steps -> both v7x TCs) + recurrence + no-pad path.
    x3 = jax.random.normal(jax.random.PRNGKey(2), (2048, 4), dtype=jnp.float32)
    out3 = jax.block_until_ready(positional_encoding(
        x3, num_freqs=K, lane_width=128, block_rows=8))
    ref3 = positional_encoding_ref(x3, num_freqs=K)
    assert out3.shape == (2048, 4 * (1 + 2 * K)), out3.shape
    assert jnp.allclose(out3, ref3, atol=1e-5, rtol=1e-5)

    # 4) bf16 output path (compute in f32, cast on store; (16,128) tiling).
    x4 = jax.random.normal(jax.random.PRNGKey(3), (256, 4), dtype=jnp.float32)
    out4 = jax.block_until_ready(positional_encoding(
        x4, num_freqs=K, out_dtype=jnp.bfloat16))
    ref4 = positional_encoding_ref(x4, num_freqs=K)
    assert out4.dtype == jnp.bfloat16
    assert jnp.allclose(out4.astype(jnp.float32), ref4, atol=3e-2, rtol=3e-2)

    # 5) Aligned-D fused path (D % 128 == 0): final layout written by the kernel.
    x5 = jax.random.normal(jax.random.PRNGKey(4), (64, 128), dtype=jnp.float32)
    out5 = jax.block_until_ready(positional_encoding(x5, num_freqs=3))
    ref5 = positional_encoding_ref(x5, num_freqs=3)
    assert out5.shape == (64, 128 * 7), out5.shape
    assert jnp.allclose(out5, ref5, atol=1e-5, rtol=1e-5)

    print("KERNEL_OK")
</pallas_src>

<mosaic_0001>
module attributes {stable_mosaic.version = 11 : i64} {
  func.func @_flat_kernel(%arg0: i32, %arg1: memref<8x128xf32, #tpu.memory_space<vmem>>, %arg2: memref<13x8x128xf32, #tpu.memory_space<vmem>>) attributes {dimension_semantics = [#tpu.dimension_semantics<parallel>], iteration_bounds = array<i64: 1>, scalar_prefetch = 0 : i64, scratch_operands = 0 : i64, tpu.core_type = #tpu.core_type<tc>, window_params = [{transform_indices = @transform_0, window_bounds = array<i64: 8, 128>}, {transform_indices = @transform_1, window_bounds = array<i64: 13, 8, 128>}]} {
    %c0 = arith.constant 0 : index
    %c0_0 = arith.constant 0 : index
    %0 = vector.load %arg1[%c0, %c0_0] : memref<8x128xf32, #tpu.memory_space<vmem>>, vector<8x128xf32>
    %cst = arith.constant 1.000000e+00 : f32
    %1 = vector.broadcast %cst : f32 to vector<8x128xf32>
    %2 = arith.mulf %0, %1 : vector<8x128xf32>
    %3 = math.sin %2 : vector<8x128xf32>
    %4 = math.cos %2 : vector<8x128xf32>
    %cst_1 = arith.constant 2.000000e+00 : f32
    %5 = vector.broadcast %cst_1 : f32 to vector<8x128xf32>
    %6 = arith.mulf %5, %3 : vector<8x128xf32>
    %7 = arith.mulf %6, %4 : vector<8x128xf32>
    %cst_2 = arith.constant 2.000000e+00 : f32
    %8 = vector.broadcast %cst_2 : f32 to vector<8x128xf32>
    %9 = arith.mulf %8, %3 : vector<8x128xf32>
    %10 = arith.mulf %9, %3 : vector<8x128xf32>
    %cst_3 = arith.constant 1.000000e+00 : f32
    %11 = vector.broadcast %cst_3 : f32 to vector<8x128xf32>
    %12 = arith.subf %11, %10 : vector<8x128xf32>
    %cst_4 = arith.constant 4.000000e+00 : f32
    %13 = vector.broadcast %cst_4 : f32 to vector<8x128xf32>
    %14 = arith.mulf %0, %13 : vector<8x128xf32>
    %15 = math.sin %14 : vector<8x128xf32>
    %16 = math.cos %14 : vector<8x128xf32>
    %cst_5 = arith.constant 2.000000e+00 : f32
    %17 = vector.broadcast %cst_5 : f32 to vector<8x128xf32>
    %18 = arith.mulf %17, %15 : vector<8x128xf32>
    %19 = arith.mulf %18, %16 : vector<8x128xf32>
    %cst_6 = arith.constant 2.000000e+00 : f32
    %20 = vector.broadcast %cst_6 : f32 to vector<8x128xf32>
    %21 = arith.mulf %20, %15 : vector<8x128xf32>
    %22 = arith.mulf %21, %15 : vector<8x128xf32>
    %cst_7 = arith.constant 1.000000e+00 : f32
    %23 = vector.broadcast %cst_7 : f32 to vector<8x128xf32>
    %24 = arith.subf %23, %22 : vector<8x128xf32>
    %cst_8 = arith.constant 1.600000e+01 : f32
    %25 = vector.broadcast %cst_8 : f32 to vector<8x128xf32>
    %26 = arith.mulf %0, %25 : vector<8x128xf32>
    %27 = math.sin %26 : vector<8x128xf32>
    %28 = math.cos %26 : vector<8x128xf32>
    %cst_9 = arith.constant 2.000000e+00 : f32
    %29 = vector.broadcast %cst_9 : f32 to vector<8x128xf32>
    %30 = arith.mulf %29, %27 : vector<8x128xf32>
    %31 = arith.mulf %30, %28 : vector<8x128xf32>
    %cst_10 = arith.constant 2.000000e+00 : f32
    %32 = vector.broadcast %cst_10 : f32 to vector<8x128xf32>
    %33 = arith.mulf %32, %27 : vector<8x128xf32>
    %34 = arith.mulf %33, %27 : vector<8x128xf32>
    %cst_11 = arith.constant 1.000000e+00 : f32
    %35 = vector.broadcast %cst_11 : f32 to vector<8x128xf32>
    %36 = arith.subf %35, %34 : vector<8x128xf32>
    %c0_12 = arith.constant 0 : index
    %c0_13 = arith.constant 0 : index
    %c0_14 = arith.constant 0 : index
    %37 = vector.load %arg2[%c0_12, %c0_13, %c0_14] : memref<13x8x128xf32, #tpu.memory_space<vmem>>, vector<1x8x128xf32>
    %38 = vector.shape_cast %37 : vector<1x8x128xf32> to vector<8x128xf32>
    %39 = vector.shape_cast %0 : vector<8x128xf32> to vector<1x8x128xf32>
    tpu.vector_store %arg2[%c0_12, %c0_13, %c0_14], %39 {strides = array<i32>} : memref<13x8x128xf32, #tpu.memory_space<vmem>>, vector<1x8x128xf32>,
    %c1 = arith.constant 1 : index
    %c0_15 = arith.constant 0 : index
    %c0_16 = arith.constant 0 : index
    %40 = vector.load %arg2[%c1, %c0_15, %c0_16] : memref<13x8x128xf32, #tpu.memory_space<vmem>>, vector<1x8x128xf32>
    %41 = vector.shape_cast %40 : vector<1x8x128xf32> to vector<8x128xf32>
    %42 = vector.shape_cast %3 : vector<8x128xf32> to vector<1x8x128xf32>
    tpu.vector_store %arg2[%c1, %c0_15, %c0_16], %42 {strides = array<i32>} : memref<13x8x128xf32, #tpu.memory_space<vmem>>, vector<1x8x128xf32>,
    %c2 = arith.constant 2 : index
    %c0_17 = arith.constant 0 : index
    %c0_18 = arith.constant 0 : index
    %43 = vector.load %arg2[%c2, %c0_17, %c0_18] : memref<13x8x128xf32, #tpu.memory_space<vmem>>, vector<1x8x128xf32>
    %44 = vector.shape_cast %43 : vector<1x8x128xf32> to vector<8x128xf32>
    %45 = vector.shape_cast %4 : vector<8x128xf32> to vector<1x8x128xf32>
    tpu.vector_store %arg2[%c2, %c0_17, %c0_18], %45 {strides = array<i32>} : memref<13x8x128xf32, #tpu.memory_space<vmem>>, vector<1x8x128xf32>,
    %c3 = arith.constant 3 : index
    %c0_19 = arith.constant 0 : index
    %c0_20 = arith.constant 0 : index
    %46 = vector.load %arg2[%c3, %c0_19, %c0_20] : memref<13x8x128xf32, #tpu.memory_space<vmem>>, vector<1x8x128xf32>
    %47 = vector.shape_cast %46 : vector<1x8x128xf32> to vector<8x128xf32>
    %48 = vector.shape_cast %7 : vector<8x128xf32> to vector<1x8x128xf32>
    tpu.vector_store %arg2[%c3, %c0_19, %c0_20], %48 {strides = array<i32>} : memref<13x8x128xf32, #tpu.memory_space<vmem>>, vector<1x8x128xf32>,
    %c4 = arith.constant 4 : index
    %c0_21 = arith.constant 0 : index
    %c0_22 = arith.constant 0 : index
    %49 = vector.load %arg2[%c4, %c0_21, %c0_22] : memref<13x8x128xf32, #tpu.memory_space<vmem>>, vector<1x8x128xf32>
    %50 = vector.shape_cast %49 : vector<1x8x128xf32> to vector<8x128xf32>
    %51 = vector.shape_cast %12 : vector<8x128xf32> to vector<1x8x128xf32>
    tpu.vector_store %arg2[%c4, %c0_21, %c0_22], %51 {strides = array<i32>} : memref<13x8x128xf32, #tpu.memory_space<vmem>>, vector<1x8x128xf32>,
    %c5 = arith.constant 5 : index
    %c0_23 = arith.constant 0 : index
    %c0_24 = arith.constant 0 : index
    %52 = vector.load %arg2[%c5, %c0_23, %c0_24] : memref<13x8x128xf32, #tpu.memory_space<vmem>>, vector<1x8x128xf32>
    %53 = vector.shape_cast %52 : vector<1x8x128xf32> to vector<8x128xf32>
    %54 = vector.shape_cast %15 : vector<8x128xf32> to vector<1x8x128xf32>
    tpu.vector_store %arg2[%c5, %c0_23, %c0_24], %54 {strides = array<i32>} : memref<13x8x128xf32, #tpu.memory_space<vmem>>, vector<1x8x128xf32>,
    %c6 = arith.constant 6 : index
    %c0_25 = arith.constant 0 : index
    %c0_26 = arith.constant 0 : index
    %55 = vector.load %arg2[%c6, %c0_25, %c0_26] : memref<13x8x128xf32, #tpu.memory_space<vmem>>, vector<1x8x128xf32>
    %56 = vector.shape_cast %55 : vector<1x8x128xf32> to vector<8x128xf32>
    %57 = vector.shape_cast %16 : vector<8x128xf32> to vector<1x8x128xf32>
    tpu.vector_store %arg2[%c6, %c0_25, %c0_26], %57 {strides = array<i32>} : memref<13x8x128xf32, #tpu.memory_space<vmem>>, vector<1x8x128xf32>,
    %c7 = arith.constant 7 : index
    %c0_27 = arith.constant 0 : index
    %c0_28 = arith.constant 0 : index
    %58 = vector.load %arg2[%c7, %c0_27, %c0_28] : memref<13x8x128xf32, #tpu.memory_space<vmem>>, vector<1x8x128xf32>
    %59 = vector.shape_cast %58 : vector<1x8x128xf32> to vector<8x128xf32>
    %60 = vector.shape_cast %19 : vector<8x128xf32> to vector<1x8x128xf32>
    tpu.vector_store %arg2[%c7, %c0_27, %c0_28], %60 {strides = array<i32>} : memref<13x8x128xf32, #tpu.memory_space<vmem>>, vector<1x8x128xf32>,
    %c8 = arith.constant 8 : index
    %c0_29 = arith.constant 0 : index
    %c0_30 = arith.constant 0 : index
    %61 = vector.load %arg2[%c8, %c0_29, %c0_30] : memref<13x8x128xf32, #tpu.memory_space<vmem>>, vector<1x8x128xf32>
    %62 = vector.shape_cast %61 : vector<1x8x128xf32> to vector<8x128xf32>
    %63 = vector.shape_cast %24 : vector<8x128xf32> to vector<1x8x128xf32>
    tpu.vector_store %arg2[%c8, %c0_29, %c0_30], %63 {strides = array<i32>} : memref<13x8x128xf32, #tpu.memory_space<vmem>>, vector<1x8x128xf32>,
    %c9 = arith.constant 9 : index
    %c0_31 = arith.constant 0 : index
    %c0_32 = arith.constant 0 : index
    %64 = vector.load %arg2[%c9, %c0_31, %c0_32] : memref<13x8x128xf32, #tpu.memory_space<vmem>>, vector<1x8x128xf32>
    %65 = vector.shape_cast %64 : vector<1x8x128xf32> to vector<8x128xf32>
    %66 = vector.shape_cast %27 : vector<8x128xf32> to vector<1x8x128xf32>
    tpu.vector_store %arg2[%c9, %c0_31, %c0_32], %66 {strides = array<i32>} : memref<13x8x128xf32, #tpu.memory_space<vmem>>, vector<1x8x128xf32>,
    %c10 = arith.constant 10 : index
    %c0_33 = arith.constant 0 : index
    %c0_34 = arith.constant 0 : index
    %67 = vector.load %arg2[%c10, %c0_33, %c0_34] : memref<13x8x128xf32, #tpu.memory_space<vmem>>, vector<1x8x128xf32>
    %68 = vector.shape_cast %67 : vector<1x8x128xf32> to vector<8x128xf32>
    %69 = vector.shape_cast %28 : vector<8x128xf32> to vector<1x8x128xf32>
    tpu.vector_store %arg2[%c10, %c0_33, %c0_34], %69 {strides = array<i32>} : memref<13x8x128xf32, #tpu.memory_space<vmem>>, vector<1x8x128xf32>,
    %c11 = arith.constant 11 : index
    %c0_35 = arith.constant 0 : index
    %c0_36 = arith.constant 0 : index
    %70 = vector.load %arg2[%c11, %c0_35, %c0_36] : memref<13x8x128xf32, #tpu.memory_space<vmem>>, vector<1x8x128xf32>
    %71 = vector.shape_cast %70 : vector<1x8x128xf32> to vector<8x128xf32>
    %72 = vector.shape_cast %31 : vector<8x128xf32> to vector<1x8x128xf32>
    tpu.vector_store %arg2[%c11, %c0_35, %c0_36], %72 {strides = array<i32>} : memref<13x8x128xf32, #tpu.memory_space<vmem>>, vector<1x8x128xf32>,
    %c12 = arith.constant 12 : index
    %c0_37 = arith.constant 0 : index
    %c0_38 = arith.constant 0 : index
    %73 = vector.load %arg2[%c12, %c0_37, %c0_38] : memref<13x8x128xf32, #tpu.memory_space<vmem>>, vector<1x8x128xf32>
    %74 = vector.shape_cast %73 : vector<1x8x128xf32> to vector<8x128xf32>
    %75 = vector.shape_cast %36 : vector<8x128xf32> to vector<1x8x128xf32>
    tpu.vector_store %arg2[%c12, %c0_37, %c0_38], %75 {strides = array<i32>} : memref<13x8x128xf32, #tpu.memory_space<vmem>>, vector<1x8x128xf32>,
    return
  }
  func.func @transform_0(%arg0: i32) -> (i32, i32) {
    %c0_i32 = arith.constant 0 : i32
    %c0_i32_0 = arith.constant 0 : i32
    return %arg0, %c0_i32 : i32, i32
  }
  func.func @transform_1(%arg0: i32) -> (i32, i32, i32) {
    %c0_i32 = arith.constant 0 : i32
    %c0_i32_0 = arith.constant 0 : i32
    %c0_i32_1 = arith.constant 0 : i32
    return %c0_i32, %arg0, %c0_i32_0 : i32, i32, i32
  }
}

</mosaic_0001>

<llo_original>
// kernel: positional_encoding.1
$region0: #{positional_encoding.1}
  #allocation0 [shape = 'u32[]', space=smem, size = 0x4, offset = 0x4, fixed_abs, tag = 'smem constant byte address 0x4 - core index']
  #allocation1 [shape = 'u32[72,128]{1,0:T(1,128)}', space=vmem, size = 0x9000, scoped, tag = 'internal scratch']
  %s0 = inlined_call_operand.vmem [shape: f32[8,128], index: 0, kind: input, shape index: {}]
  %s1 = inlined_call_operand.vmem [shape: f32[13,8,128], index: 1, kind: output, shape index: {}]
  %s2 = sld [smem:[#allocation0]]
  $region14: #{positional_encoding.1} parent=0
    _
  %s4 = ssub.s32 1, %s2
  %s5 = scalar_select 0, %s4, %s2
  // Predicated region
  $region2: #{positional_encoding.1} parent=0 // pred_check
    _
  $region3: #{positional_encoding.1} parent=0 // pred_check_branch
    %7 = sbr.rel (0) target = $region5
  $region4: #{positional_encoding.1} parent=0 // pred_region
    _
  $region5: #{positional_encoding.1} parent=0 // pred_fallthru
    _
  %v8 = vld [vmem:[%s0] sm:$0xff]
  %v9 = vand.u32 2147483647, %v8
  %vm10 = vcmp.le.f32.partialorder %v9, 0.7853982
  %vm11 = vcmp.lt.s32.totalorder %v8, 0
  %v12 = vand.u32 %v8, 2139095040
  %v13 = vshrl.u32 %v12, 23
  %v14 = vsub.s32 %v13, 127
  %v15 = vand.u32 2147483647, %v8
  %v16 = vand.u32 %v15, 8388607
  %v17 = vor.u32 %v16, 8388608
  %v18 = vsub.s32 0, %v17
  %v19 = vadd.s32 %v14, 1
  %vm20 = vcmp.gt.s32.totalorder %v19, 0
  %v21 = vsel %vm20, %v19, 0
  %v22 = vshrl.u32 %v21, 5
  %v23 = vand.u32 %v21, 31
  %v24 = vsub.s32 32, %v23
  %v25 = vshrl.u32 683565275, %v24
  %v26 = vshll.u32 683565275, %v23
  %v27 = vshrl.u32 2475754826, %v24
  %v28 = vor.u32 %v26, %v27
  %v29 = vshll.u32 2475754826, %v23
  %v30 = vshrl.u32 2131351028, %v24
  %v31 = vor.u32 %v29, %v30
  %v32 = vshll.u32 2131351028, %v23
  %v33 = vshrl.u32 2102212464, %v24
  %v34 = vor.u32 %v32, %v33
  %v35 = vshll.u32 2102212464, %v23
  %v36 = vshrl.u32 920167782, %v24
  %v37 = vor.u32 %v35, %v36
  %v38 = vshll.u32 920167782, %v23
  %v39 = vshrl.u32 1326507024, %v24
  %v40 = vor.u32 %v38, %v39
  %vm41 = vcmp.lt.s32.totalorder %v22, 1
  %vm42 = vcmp.lt.s32.totalorder %v22, 2
  %vm43 = vcmp.lt.s32.totalorder %v22, 3
  %vm44 = vcmp.lt.s32.totalorder %v22, 4
  %v45 = vsel %vm41, %v25, %v28
  %v46 = vsel %vm44, %v34, 2102212464
  %v47 = vsel %vm43, %v31, %v46
  %v48 = vsel %vm42, %v45, %v47
  %v49 = vsel %vm41, %v28, %v31
  %v50 = vsel %vm44, %v37, 920167782
  %v51 = vsel %vm43, %v34, %v50
  %v52 = vsel %vm42, %v49, %v51
  %v53 = vsel %vm41, %v31, %v34
  %v54 = vsel %vm44, %v40, 1326507024
  %v55 = vsel %vm43, %v37, %v54
  %v56 = vsel %vm42, %v53, %v55
  %v57 = vshll.u32 %v17, 8
  %v58 = vand.u32 %v57, 65535
  %v59 = vshrl.u32 %v57, 16
  %v60 = vand.u32 %v56, 65535
  %v61 = vshrl.u32 %v56, 16
  %v62 = vmul.u32 %v58, %v60
  %v63 = vmul.u32 %v58, %v61
  %v64 = vmul.u32 %v59, %v60
  %v65 = vmul.u32 %v59, %v61
  %v66 = vshll.u32 %v63, 16
  %v67 = vshrl.u32 %v63, 16
  %v68 = vshll.u32 %v64, 16
  %v69 = vshrl.u32 %v64, 16
  %vm70 = vc.u32 %v62, %v66
  %v71 = vsel %vm70, 1, 0
  %v72 = vadd.s32 %v62, %v66
  %v73 = vadd.s32 %v65, %v71
  %vm74 = vc.u32 %v72, %v68
  %v75 = vsel %vm74, 1, 0
  %v76 = vadd.s32 %v72, %v68
  %v77 = vadd.s32 %v73, %v75
  %v78 = vadd.s32 %v77, %v67
  %v79 = vadd.s32 %v78, %v69
  %v80 = vand.u32 %v57, 65535
  %v81 = vshrl.u32 %v57, 16
  %v82 = vand.u32 %v52, 65535
  %v83 = vshrl.u32 %v52, 16
  %v84 = vmul.u32 %v80, %v82
  %v85 = vmul.u32 %v80, %v83
  %v86 = vmul.u32 %v81, %v82
  %v87 = vmul.u32 %v81, %v83
  %v88 = vshll.u32 %v85, 16
  %v89 = vshrl.u32 %v85, 16
  %v90 = vshll.u32 %v86, 16
  %v91 = vshrl.u32 %v86, 16
  %vm92 = vc.u32 %v84, %v88
  %v93 = vsel %vm92, 1, 0
  %v94 = vadd.s32 %v84, %v88
  %v95 = vadd.s32 %v87, %v93
  %vm96 = vc.u32 %v94, %v90
  %v97 = vsel %vm96, 1, 0
  %v98 = vadd.s32 %v94, %v90
  %v99 = vadd.s32 %v95, %v97
  %v100 = vadd.s32 %v99, %v89
  %v101 = vadd.s32 %v100, %v91
  %v102 = vmul.u32 %v57, %v48
  %v103 = vadd.s32 %v79, %v98
  %vm104 = vc.u32 %v79, %v98
  %v105 = vadd.s32 %v101, 1
  %v106 = vsel %vm104, %v105, %v101
  %v107 = vadd.s32 %v102, %v106
  %v108 = vadd.s32 %v107, 536870912
  %v109 = vshrl.u32 %v108, 30
  %v110 = vshll.u32 %v109, 30
  %v111 = vsub.s32 %v107, %v110
  %vm112 = vcmp.lt.s32.totalorder %v111, 0
  %v113 = vsub.s32 0, %v111
  %v114 = vsel %vm112, %v113, %v111
  %v115 = vclz %v114
  %v116 = vsub.s32 %v115, 2
  %vm117 = vcmp.gt.s32.totalorder 0, %v116
  %v118 = vsel %vm117, 0, %v116
  %v119 = vsub.s32 32, %v118
  %v120 = vshll.u32 %v111, %v118
  %v121 = vshrl.u32 %v103, %v119
  %v122 = vor.u32 %v120, %v121
  %v123 = vsub.s32 4294967266, %v118
  %v124 = vadd.s32 %v123, 127
  %v125 = vshll.u32 %v124, 23
  %v126 = vor.u32 4788187, %v125
  %v127 = vand.u32 2147483647, %v126
  %v129 = vcvt.s32.f32 %v122
  %v130 = vmul.f32 %v129, %v127
  %v131 = vxor.u32 %v130, 2147483648
  %v132 = vsel %vm11, %v131, %v130
  %v133 = vsub.s32 4, %v109
  %v134 = vsel %vm11, %v133, %v109
  %v135 = vsel %vm10, %v8, %v132
  %v136 = vsel %vm10, 0, %v134
  %v137 = vmul.f32 %v135, %v135
  %v138 = vmul.f32 %v137, -0.001358992
  %v139 = vadd.f32 %v138, 0.041655596
  %v140 = vmul.f32 %v137, %v139
  %v141 = vadd.f32 %v140, -0.4999988
  %v142 = vmul.f32 %v137, %v141
  %v143 = vadd.f32 1.0, %v142
  %v144 = vmul.f32 %v135, %v135
  %v145 = vmul.f32 %v144, -0.00019511016
  %v146 = vadd.f32 %v145, 0.008332121
  %v147 = vmul.f32 %v144, %v146
  %v148 = vadd.f32 %v147, -0.16666654
  %v149 = vmul.f32 %v144, %v148
  %v150 = vadd.f32 %v149, 1.0
  %v151 = vmul.f32 %v150, %v135
  %vm152 = vweird.f32 %v8
  %v153 = vadd.s32 %v136, 3
  %v154 = vand.u32 %v153, 3
  %vm155 = vcmp.lt.s32.totalorder %v154, 2
  %vm156 = vcmp.eq.s32.totalorder %v154, 0
  %v157 = vxor.u32 %v151, 2147483648
  %v158 = vsel %vm156, %v143, %v157
  %vm159 = vcmp.eq.s32.totalorder %v154, 2
  %v160 = vxor.u32 %v143, 2147483648
  %v161 = vsel %vm159, %v160, %v151
  %v162 = vsel %vm155, %v158, %v161
  %v163 = vsel %vm152, nan, %v162
  %v164 = vand.u32 2147483647, %v8
  %vm165 = vcmp.le.f32.partialorder %v164, 0.7853982
  %vm166 = vcmp.lt.s32.totalorder %v8, 0
  %v167 = vand.u32 %v8, 2139095040
  %v168 = vshrl.u32 %v167, 23
  %v169 = vsub.s32 %v168, 127
  %v170 = vand.u32 2147483647, %v8
  %v171 = vand.u32 %v170, 8388607
  %v172 = vor.u32 %v171, 8388608
  %v173 = vsub.s32 0, %v172
  %v174 = vadd.s32 %v169, 1
  %vm175 = vcmp.gt.s32.totalorder %v174, 0
  %v176 = vsel %vm175, %v174, 0
  %v177 = vshrl.u32 %v176, 5
  %v178 = vand.u32 %v176, 31
  %v179 = vsub.s32 32, %v178
  %v180 = vshrl.u32 683565275, %v179
  %v181 = vshll.u32 683565275, %v178
  %v182 = vshrl.u32 2475754826, %v179
  %v183 = vor.u32 %v181, %v182
  %v184 = vshll.u32 2475754826, %v178
  %v185 = vshrl.u32 2131351028, %v179
  %v186 = vor.u32 %v184, %v185
  %v187 = vshll.u32 2131351028, %v178
  %v188 = vshrl.u32 2102212464, %v179
  %v189 = vor.u32 %v187, %v188
  %v190 = vshll.u32 2102212464, %v178
  %v191 = vshrl.u32 920167782, %v179
  %v192 = vor.u32 %v190, %v191
  %v193 = vshll.u32 920167782, %v178
  %v194 = vshrl.u32 1326507024, %v179
  %v195 = vor.u32 %v193, %v194
  %vm196 = vcmp.lt.s32.totalorder %v177, 1
  %vm197 = vcmp.lt.s32.totalorder %v177, 2
  %vm198 = vcmp.lt.s32.totalorder %v177, 3
  %vm199 = vcmp.lt.s32.totalorder %v177, 4
  %v200 = vsel %vm196, %v180, %v183
  %v201 = vsel %vm199, %v189, 2102212464
  %v202 = vsel %vm198, %v186, %v201
  %v203 = vsel %vm197, %v200, %v202
  %v204 = vsel %vm196, %v183, %v186
  %v205 = vsel %vm199, %v192, 920167782
  %v206 = vsel %vm198, %v189, %v205
  %v207 = vsel %vm197, %v204, %v206
  %v208 = vsel %vm196, %v186, %v189
  %v209 = vsel %vm199, %v195, 1326507024
  %v210 = vsel %vm198, %v192, %v209
  %v211 = vsel %vm197, %v208, %v210
  %v212 = vshll.u32 %v172, 8
  %v213 = vand.u32 %v212, 65535
  %v214 = vshrl.u32 %v212, 16
  %v215 = vand.u32 %v211, 65535
  %v216 = vshrl.u32 %v211, 16
  %v217 = vmul.u32 %v213, %v215
  %v218 = vmul.u32 %v213, %v216
  %v219 = vmul.u32 %v214, %v215
  %v220 = vmul.u32 %v214, %v216
  %v221 = vshll.u32 %v218, 16
  %v222 = vshrl.u32 %v218, 16
  %v223 = vshll.u32 %v219, 16
  %v224 = vshrl.u32 %v219, 16
  %vm225 = vc.u32 %v217, %v221
  %v226 = vsel %vm225, 1, 0
  %v227 = vadd.s32 %v217, %v221
  %v228 = vadd.s32 %v220, %v226
  %vm229 = vc.u32 %v227, %v223
  %v230 = vsel %vm229, 1, 0
  %v231 = vadd.s32 %v227, %v223
  %v232 = vadd.s32 %v228, %v230
  %v233 = vadd.s32 %v232, %v222
  %v234 = vadd.s32 %v233, %v224
  %v235 = vand.u32 %v212, 65535
  %v236 = vshrl.u32 %v212, 16
  %v237 = vand.u32 %v207, 65535
  %v238 = vshrl.u32 %v207, 16
  %v239 = vmul.u32 %v235, %v237
  %v240 = vmul.u32 %v235, %v238
  %v241 = vmul.u32 %v236, %v237
  %v242 = vmul.u32 %v236, %v238
  %v243 = vshll.u32 %v240, 16
  %v244 = vshrl.u32 %v240, 16
  %v245 = vshll.u32 %v241, 16
  %v246 = vshrl.u32 %v241, 16
  %vm247 = vc.u32 %v239, %v243
  %v248 = vsel %vm247, 1, 0
  %v249 = vadd.s32 %v239, %v243
  %v250 = vadd.s32 %v242, %v248
  %vm251 = vc.u32 %v249, %v245
  %v252 = vsel %vm251, 1, 0
  %v253 = vadd.s32 %v249, %v245
  %v254 = vadd.s32 %v250, %v252
  %v255 = vadd.s32 %v254, %v244
  %v256 = vadd.s32 %v255, %v246
  %v257 = vmul.u32 %v212, %v203
  %v258 = vadd.s32 %v234, %v253
  %vm259 = vc.u32 %v234, %v253
  %v260 = vadd.s32 %v256, 1
  %v261 = vsel %vm259, %v260, %v256
  %v262 = vadd.s32 %v257, %v261
  %v263 = vadd.s32 %v262, 536870912
  %v264 = vshrl.u32 %v263, 30
  %v265 = vshll.u32 %v264, 30
  %v266 = vsub.s32 %v262, %v265
  %vm267 = vcmp.lt.s32.totalorder %v266, 0
  %v268 = vsub.s32 0, %v266
  %v269 = vsel %vm267, %v268, %v266
  %v270 = vclz %v269
  %v271 = vsub.s32 %v270, 2
  %vm272 = vcmp.gt.s32.totalorder 0, %v271
  %v273 = vsel %vm272, 0, %v271
  %v274 = vsub.s32 32, %v273
  %v275 = vshll.u32 %v266, %v273
  %v276 = vshrl.u32 %v258, %v274
  %v277 = vor.u32 %v275, %v276
  %v278 = vsub.s32 4294967266, %v273
  %v279 = vadd.s32 %v278, 127
  %v280 = vshll.u32 %v279, 23
  %v281 = vor.u32 4788187, %v280
  %v282 = vand.u32 2147483647, %v281
  %v284 = vcvt.s32.f32 %v277
  %v285 = vmul.f32 %v284, %v282
  %v286 = vxor.u32 %v285, 2147483648
  %v287 = vsel %vm166, %v286, %v285
  %v288 = vsub.s32 4, %v264
  %v289 = vsel %vm166, %v288, %v264
  %v290 = vsel %vm165, %v8, %v287
  %v291 = vsel %vm165, 0, %v289
  %v292 = vmul.f32 %v290, %v290
  %v293 = vmul.f32 %v292, -0.001358992
  %v294 = vadd.f32 %v293, 0.041655596
  %v295 = vmul.f32 %v292, %v294
  %v296 = vadd.f32 %v295, -0.4999988
  %v297 = vmul.f32 %v292, %v296
  %v298 = vadd.f32 1.0, %v297
  %v299 = vmul.f32 %v290, %v290
  %v300 = vmul.f32 %v299, -0.00019511016
  %v301 = vadd.f32 %v300, 0.008332121
  %v302 = vmul.f32 %v299, %v301
  %v303 = vadd.f32 %v302, -0.16666654
  %v304 = vmul.f32 %v299, %v303
  %v305 = vadd.f32 %v304, 1.0
  %v306 = vmul.f32 %v305, %v290
  %vm307 = vweird.f32 %v8
  %v308 = vand.u32 %v291, 3
  %vm309 = vcmp.lt.s32.totalorder %v308, 2
  %vm310 = vcmp.eq.s32.totalorder %v308, 0
  %v311 = vxor.u32 %v306, 2147483648
  %v312 = vsel %vm310, %v298, %v311
  %vm313 = vcmp.eq.s32.totalorder %v308, 2
  %v314 = vxor.u32 %v298, 2147483648
  %v315 = vsel %vm313, %v314, %v306
  %v316 = vsel %vm309, %v312, %v315
  %v317 = vsel %vm307, nan, %v316
  %v318 = vmul.f32 %v163, 2.0
  %v319 = vmul.f32 %v318, %v317
  %v320 = vmul.f32 %v318, %v163
  %v321 = vsub.f32 1.0, %v320
  %v322 = vmul.f32 %v8, 4.0
  %v323 = vand.u32 2147483647, %v322
  %vm324 = vcmp.le.f32.partialorder %v323, 0.7853982
  %vm325 = vcmp.lt.s32.totalorder %v322, 0
  %v326 = vand.u32 %v322, 2139095040
  %v327 = vshrl.u32 %v326, 23
  %v328 = vsub.s32 %v327, 127
  %v329 = vand.u32 2147483647, %v322
  %v330 = vand.u32 %v329, 8388607
  %v331 = vor.u32 %v330, 8388608
  %v332 = vsub.s32 0, %v331
  %v333 = vadd.s32 %v328, 1
  %vm334 = vcmp.gt.s32.totalorder %v333, 0
  %v335 = vsel %vm334, %v333, 0
  %v336 = vshrl.u32 %v335, 5
  %v337 = vand.u32 %v335, 31
  %v338 = vsub.s32 32, %v337
  %v339 = vshrl.u32 683565275, %v338
  %v340 = vshll.u32 683565275, %v337
  %v341 = vshrl.u32 2475754826, %v338
  %v342 = vor.u32 %v340, %v341
  %v343 = vshll.u32 2475754826, %v337
  %v344 = vshrl.u32 2131351028, %v338
  %v345 = vor.u32 %v343, %v344
  %v346 = vshll.u32 2131351028, %v337
  %v347 = vshrl.u32 2102212464, %v338
  %v348 = vor.u32 %v346, %v347
  %v349 = vshll.u32 2102212464, %v337
  %v350 = vshrl.u32 920167782, %v338
  %v351 = vor.u32 %v349, %v350
  %v352 = vshll.u32 920167782, %v337
  %v353 = vshrl.u32 1326507024, %v338
  %v354 = vor.u32 %v352, %v353
  %vm355 = vcmp.lt.s32.totalorder %v336, 1
  %vm356 = vcmp.lt.s32.totalorder %v336, 2
  %vm357 = vcmp.lt.s32.totalorder %v336, 3
  %vm358 = vcmp.lt.s32.totalorder %v336, 4
  %v359 = vsel %vm355, %v339, %v342
  %v360 = vsel %vm358, %v348, 2102212464
  %v361 = vsel %vm357, %v345, %v360
  %v362 = vsel %vm356, %v359, %v361
  %v363 = vsel %vm355, %v342, %v345
  %v364 = vsel %vm358, %v351, 920167782
  %v365 = vsel %vm357, %v348, %v364
  %v366 = vsel %vm356, %v363, %v365
  %v367 = vsel %vm355, %v345, %v348
  %v368 = vsel %vm358, %v354, 1326507024
  %v369 = vsel %vm357, %v351, %v368
  %v370 = vsel %vm356, %v367, %v369
  %v371 = vshll.u32 %v331, 8
  %v372 = vand.u32 %v371, 65535
  %v373 = vshrl.u32 %v371, 16
  %v374 = vand.u32 %v370, 65535
  %v375 = vshrl.u32 %v370, 16
  %v376 = vmul.u32 %v372, %v374
  %v377 = vmul.u32 %v372, %v375
  %v378 = vmul.u32 %v373, %v374
  %v379 = vmul.u32 %v373, %v375
  %v380 = vshll.u32 %v377, 16
  %v381 = vshrl.u32 %v377, 16
  %v382 = vshll.u32 %v378, 16
  %v383 = vshrl.u32 %v378, 16
  %vm384 = vc.u32 %v376, %v380
  %v385 = vsel %vm384, 1, 0
  %v386 = vadd.s32 %v376, %v380
  %v387 = vadd.s32 %v379, %v385
  %vm388 = vc.u32 %v386, %v382
  %v389 = vsel %vm388, 1, 0
  %v390 = vadd.s32 %v386, %v382
  %v391 = vadd.s32 %v387, %v389
  %v392 = vadd.s32 %v391, %v381
  %v393 = vadd.s32 %v392, %v383
  %v394 = vand.u32 %v371, 65535
  %v395 = vshrl.u32 %v371, 16
  %v396 = vand.u32 %v366, 65535
  %v397 = vshrl.u32 %v366, 16
  %v398 = vmul.u32 %v394, %v396
  %v399 = vmul.u32 %v394, %v397
  %v400 = vmul.u32 %v395, %v396
  %v401 = vmul.u32 %v395, %v397
  %v402 = vshll.u32 %v399, 16
  %v403 = vshrl.u32 %v399, 16
  %v404 = vshll.u32 %v400, 16
  %v405 = vshrl.u32 %v400, 16
  %vm406 = vc.u32 %v398, %v402
  %v407 = vsel %vm406, 1, 0
  %v408 = vadd.s32 %v398, %v402
  %v409 = vadd.s32 %v401, %v407
  %vm410 = vc.u32 %v408, %v404
  %v411 = vsel %vm410, 1, 0
  %v412 = vadd.s32 %v408, %v404
  %v413 = vadd.s32 %v409, %v411
  %v414 = vadd.s32 %v413, %v403
  %v415 = vadd.s32 %v414, %v405
  %v416 = vmul.u32 %v371, %v362
  %v417 = vadd.s32 %v393, %v412
  %vm418 = vc.u32 %v393, %v412
  %v419 = vadd.s32 %v415, 1
  %v420 = vsel %vm418, %v419, %v415
  %v421 = vadd.s32 %v416, %v420
  %v422 = vadd.s32 %v421, 536870912
  %v423 = vshrl.u32 %v422, 30
  %v424 = vshll.u32 %v423, 30
  %v425 = vsub.s32 %v421, %v424
  %vm426 = vcmp.lt.s32.totalorder %v425, 0
  %v427 = vsub.s32 0, %v425
  %v428 = vsel %vm426, %v427, %v425
  %v429 = vclz %v428
  %v430 = vsub.s32 %v429, 2
  %vm431 = vcmp.gt.s32.totalorder 0, %v430
  %v432 = vsel %vm431, 0, %v430
  %v433 = vsub.s32 32, %v432
  %v434 = vshll.u32 %v425, %v432
  %v435 = vshrl.u32 %v417, %v433
  %v436 = vor.u32 %v434, %v435
  %v437 = vsub.s32 4294967266, %v432
  %v438 = vadd.s32 %v437, 127
  %v439 = vshll.u32 %v438, 23
  %v440 = vor.u32 4788187, %v439
  %v441 = vand.u32 2147483647, %v440
  %v443 = vcvt.s32.f32 %v436
  %v444 = vmul.f32 %v443, %v441
  %v445 = vxor.u32 %v444, 2147483648
  %v446 = vsel %vm325, %v445, %v444
  %v447 = vsub.s32 4, %v423
  %v448 = vsel %vm325, %v447, %v423
  %v449 = vsel %vm324, %v322, %v446
  %v450 = vsel %vm324, 0, %v448
  %v451 = vmul.f32 %v449, %v449
  %v452 = vmul.f32 %v451, -0.001358992
  %v453 = vadd.f32 %v452, 0.041655596
  %v454 = vmul.f32 %v451, %v453
  %v455 = vadd.f32 %v454, -0.4999988
  %v456 = vmul.f32 %v451, %v455
  %v457 = vadd.f32 1.0, %v456
  %v458 = vmul.f32 %v449, %v449
  %v459 = vmul.f32 %v458, -0.00019511016
  %v460 = vadd.f32 %v459, 0.008332121
  %v461 = vmul.f32 %v458, %v460
  %v462 = vadd.f32 %v461, -0.16666654
  %v463 = vmul.f32 %v458, %v462
  %v464 = vadd.f32 %v463, 1.0
  %v465 = vmul.f32 %v464, %v449
  %vm466 = vweird.f32 %v322
  %v467 = vadd.s32 %v450, 3
  %v468 = vand.u32 %v467, 3
  %vm469 = vcmp.lt.s32.totalorder %v468, 2
  %vm470 = vcmp.eq.s32.totalorder %v468, 0
  %v471 = vxor.u32 %v465, 2147483648
  %v472 = vsel %vm470, %v457, %v471
  %vm473 = vcmp.eq.s32.totalorder %v468, 2
  %v474 = vxor.u32 %v457, 2147483648
  %v475 = vsel %vm473, %v474, %v465
  %v476 = vsel %vm469, %v472, %v475
  %v477 = vsel %vm466, nan, %v476
  %v478 = vand.u32 2147483647, %v322
  %vm479 = vcmp.le.f32.partialorder %v478, 0.7853982
  %vm480 = vcmp.lt.s32.totalorder %v322, 0
  %v481 = vand.u32 %v322, 2139095040
  %v482 = vshrl.u32 %v481, 23
  %v483 = vsub.s32 %v482, 127
  %v484 = vand.u32 2147483647, %v322
  %v485 = vand.u32 %v484, 8388607
  %v486 = vor.u32 %v485, 8388608
  %v487 = vsub.s32 0, %v486
  %v488 = vadd.s32 %v483, 1
  %vm489 = vcmp.gt.s32.totalorder %v488, 0
  %v490 = vsel %vm489, %v488, 0
  %v491 = vshrl.u32 %v490, 5
  %v492 = vand.u32 %v490, 31
  %v493 = vsub.s32 32, %v492
  %v494 = vshrl.u32 683565275, %v493
  %v495 = vshll.u32 683565275, %v492
  %v496 = vshrl.u32 2475754826, %v493
  %v497 = vor.u32 %v495, %v496
  %v498 = vshll.u32 2475754826, %v492
  %v499 = vshrl.u32 2131351028, %v493
  %v500 = vor.u32 %v498, %v499
  %v501 = vshll.u32 2131351028, %v492
  %v502 = vshrl.u32 2102212464, %v493
  %v503 = vor.u32 %v501, %v502
  %v504 = vshll.u32 2102212464, %v492
  %v505 = vshrl.u32 920167782, %v493
  %v506 = vor.u32 %v504, %v505
  %v507 = vshll.u32 920167782, %v492
  %v508 = vshrl.u32 1326507024, %v493
  %v509 = vor.u32 %v507, %v508
  %vm510 = vcmp.lt.s32.totalorder %v491, 1
  %vm511 = vcmp.lt.s32.totalorder %v491, 2
  %vm512 = vcmp.lt.s32.totalorder %v491, 3
  %vm513 = vcmp.lt.s32.totalorder %v491, 4
  %v514 = vsel %vm510, %v494, %v497
  %v515 = vsel %vm513, %v503, 2102212464
  %v516 = vsel %vm512, %v500, %v515
  %v517 = vsel %vm511, %v514, %v516
  %v518 = vsel %vm510, %v497, %v500
  %v519 = vsel %vm513, %v506, 920167782
  %v520 = vsel %vm512, %v503, %v519
  %v521 = vsel %vm511, %v518, %v520
  %v522 = vsel %vm510, %v500, %v503
  %v523 = vsel %vm513, %v509, 1326507024
  %v524 = vsel %vm512, %v506, %v523
  %v525 = vsel %vm511, %v522, %v524
  %v526 = vshll.u32 %v486, 8
  %v527 = vand.u32 %v526, 65535
  %v528 = vshrl.u32 %v526, 16
  %v529 = vand.u32 %v525, 65535
  %v530 = vshrl.u32 %v525, 16
  %v531 = vmul.u32 %v527, %v529
  %v532 = vmul.u32 %v527, %v530
  %v533 = vmul.u32 %v528, %v529
  %v534 = vmul.u32 %v528, %v530
  %v535 = vshll.u32 %v532, 16
  %v536 = vshrl.u32 %v532, 16
  %v537 = vshll.u32 %v533, 16
  %v538 = vshrl.u32 %v533, 16
  %vm539 = vc.u32 %v531, %v535
  %v540 = vsel %vm539, 1, 0
  %v541 = vadd.s32 %v531, %v535
  %v542 = vadd.s32 %v534, %v540
  %vm543 = vc.u32 %v541, %v537
  %v544 = vsel %vm543, 1, 0
  %v545 = vadd.s32 %v541, %v537
  %v546 = vadd.s32 %v542, %v544
  %v547 = vadd.s32 %v546, %v536
  %v548 = vadd.s32 %v547, %v538
  %v549 = vand.u32 %v526, 65535
  %v550 = vshrl.u32 %v526, 16
  %v551 = vand.u32 %v521, 65535
  %v552 = vshrl.u32 %v521, 16
  %v553 = vmul.u32 %v549, %v551
  %v554 = vmul.u32 %v549, %v552
  %v555 = vmul.u32 %v550, %v551
  %v556 = vmul.u32 %v550, %v552
  %v557 = vshll.u32 %v554, 16
  %v558 = vshrl.u32 %v554, 16
  %v559 = vshll.u32 %v555, 16
  %v560 = vshrl.u32 %v555, 16
  %vm561 = vc.u32 %v553, %v557
  %v562 = vsel %vm561, 1, 0
  %v563 = vadd.s32 %v553, %v557
  %v564 = vadd.s32 %v556, %v562
  %vm565 = vc.u32 %v563, %v559
  %v566 = vsel %vm565, 1, 0
  %v567 = vadd.s32 %v563, %v559
  %v568 = vadd.s32 %v564, %v566
  %v569 = vadd.s32 %v568, %v558
  %v570 = vadd.s32 %v569, %v560
  %v571 = vmul.u32 %v526, %v517
  %v572 = vadd.s32 %v548, %v567
  %vm573 = vc.u32 %v548, %v567
  %v574 = vadd.s32 %v570, 1
  %v575 = vsel %vm573, %v574, %v570
  %v576 = vadd.s32 %v571, %v575
  %v577 = vadd.s32 %v576, 536870912
  %v578 = vshrl.u32 %v577, 30
  %v579 = vshll.u32 %v578, 30
  %v580 = vsub.s32 %v576, %v579
  %vm581 = vcmp.lt.s32.totalorder %v580, 0
  %v582 = vsub.s32 0, %v580
  %v583 = vsel %vm581, %v582, %v580
  %v584 = vclz %v583
  %v585 = vsub.s32 %v584, 2
  %vm586 = vcmp.gt.s32.totalorder 0, %v585
  %v587 = vsel %vm586, 0, %v585
  %v588 = vsub.s32 32, %v587
  %v589 = vshll.u32 %v580, %v587
  %v590 = vshrl.u32 %v572, %v588
  %v591 = vor.u32 %v589, %v590
  %v592 = vsub.s32 4294967266, %v587
  %v593 = vadd.s32 %v592, 127
  %v594 = vshll.u32 %v593, 23
  %v595 = vor.u32 4788187, %v594
  %v596 = vand.u32 2147483647, %v595
  %v598 = vcvt.s32.f32 %v591
  %v599 = vmul.f32 %v598, %v596
  %v600 = vxor.u32 %v599, 2147483648
  %v601 = vsel %vm480, %v600, %v599
  %v602 = vsub.s32 4, %v578
  %v603 = vsel %vm480, %v602, %v578
  %v604 = vsel %vm479, %v322, %v601
  %v605 = vsel %vm479, 0, %v603
  %v606 = vmul.f32 %v604, %v604
  %v607 = vmul.f32 %v606, -0.001358992
  %v608 = vadd.f32 %v607, 0.041655596
  %v609 = vmul.f32 %v606, %v608
  %v610 = vadd.f32 %v609, -0.4999988
  %v611 = vmul.f32 %v606, %v610
  %v612 = vadd.f32 1.0, %v611
  %v613 = vmul.f32 %v604, %v604
  %v614 = vmul.f32 %v613, -0.00019511016
  %v615 = vadd.f32 %v614, 0.008332121
  %v616 = vmul.f32 %v613, %v615
  %v617 = vadd.f32 %v616, -0.16666654
  %v618 = vmul.f32 %v613, %v617
  %v619 = vadd.f32 %v618, 1.0
  %v620 = vmul.f32 %v619, %v604
  %vm621 = vweird.f32 %v322
  %v622 = vand.u32 %v605, 3
  %vm623 = vcmp.lt.s32.totalorder %v622, 2
  %vm624 = vcmp.eq.s32.totalorder %v622, 0
  %v625 = vxor.u32 %v620, 2147483648
  %v626 = vsel %vm624, %v612, %v625
  %vm627 = vcmp.eq.s32.totalorder %v622, 2
  %v628 = vxor.u32 %v612, 2147483648
  %v629 = vsel %vm627, %v628, %v620
  %v630 = vsel %vm623, %v626, %v629
  %v631 = vsel %vm621, nan, %v630
  %v632 = vmul.f32 %v477, 2.0
  %v633 = vmul.f32 %v632, %v631
  %v634 = vmul.f32 %v632, %v477
  %v635 = vsub.f32 1.0, %v634
  %v636 = vmul.f32 %v8, 16.0
  %v637 = vand.u32 2147483647, %v636
  %vm638 = vcmp.le.f32.partialorder %v637, 0.7853982
  %vm639 = vcmp.lt.s32.totalorder %v636, 0
  %v640 = vand.u32 %v636, 2139095040
  %v641 = vshrl.u32 %v640, 23
  %v642 = vsub.s32 %v641, 127
  %v643 = vand.u32 2147483647, %v636
  %v644 = vand.u32 %v643, 8388607
  %v645 = vor.u32 %v644, 8388608
  %v646 = vsub.s32 0, %v645
  %v647 = vadd.s32 %v642, 1
  %vm648 = vcmp.gt.s32.totalorder %v647, 0
  %v649 = vsel %vm648, %v647, 0
  %v650 = vshrl.u32 %v649, 5
  %v651 = vand.u32 %v649, 31
  %v652 = vsub.s32 32, %v651
  %v653 = vshrl.u32 683565275, %v652
  %v654 = vshll.u32 683565275, %v651
  %v655 = vshrl.u32 2475754826, %v652
  %v656 = vor.u32 %v654, %v655
  %v657 = vshll.u32 2475754826, %v651
  %v658 = vshrl.u32 2131351028, %v652
  %v659 = vor.u32 %v657, %v658
  %v660 = vshll.u32 2131351028, %v651
  %v661 = vshrl.u32 2102212464, %v652
  %v662 = vor.u32 %v660, %v661
  %v663 = vshll.u32 2102212464, %v651
  %v664 = vshrl.u32 920167782, %v652
  %v665 = vor.u32 %v663, %v664
  %v666 = vshll.u32 920167782, %v651
  %v667 = vshrl.u32 1326507024, %v652
  %v668 = vor.u32 %v666, %v667
  %vm669 = vcmp.lt.s32.totalorder %v650, 1
  %vm670 = vcmp.lt.s32.totalorder %v650, 2
  %vm671 = vcmp.lt.s32.totalorder %v650, 3
  %vm672 = vcmp.lt.s32.totalorder %v650, 4
  %v673 = vsel %vm669, %v653, %v656
  %v674 = vsel %vm672, %v662, 2102212464
  %v675 = vsel %vm671, %v659, %v674
  %v676 = vsel %vm670, %v673, %v675
  %v677 = vsel %vm669, %v656, %v659
  %v678 = vsel %vm672, %v665, 920167782
  %v679 = vsel %vm671, %v662, %v678
  %v680 = vsel %vm670, %v677, %v679
  %v681 = vsel %vm669, %v659, %v662
  %v682 = vsel %vm672, %v668, 1326507024
  %v683 = vsel %vm671, %v665, %v682
  %v684 = vsel %vm670, %v681, %v683
  %v685 = vshll.u32 %v645, 8
  %v686 = vand.u32 %v685, 65535
  %v687 = vshrl.u32 %v685, 16
  %v688 = vand.u32 %v684, 65535
  %v689 = vshrl.u32 %v684, 16
  %v690 = vmul.u32 %v686, %v688
  %v691 = vmul.u32 %v686, %v689
  %v692 = vmul.u32 %v687, %v688
  %v693 = vmul.u32 %v687, %v689
  %v694 = vshll.u32 %v691, 16
  %v695 = vshrl.u32 %v691, 16
  %v696 = vshll.u32 %v692, 16
  %v697 = vshrl.u32 %v692, 16
  %vm698 = vc.u32 %v690, %v694
  %v699 = vsel %vm698, 1, 0
  %v700 = vadd.s32 %v690, %v694
  %v701 = vadd.s32 %v693, %v699
  %vm702 = vc.u32 %v700, %v696
  %v703 = vsel %vm702, 1, 0
  %v704 = vadd.s32 %v700, %v696
  %v705 = vadd.s32 %v701, %v703
  %v706 = vadd.s32 %v705, %v695
  %v707 = vadd.s32 %v706, %v697
  %v708 = vand.u32 %v685, 65535
  %v709 = vshrl.u32 %v685, 16
  %v710 = vand.u32 %v680, 65535
  %v711 = vshrl.u32 %v680, 16
  %v712 = vmul.u32 %v708, %v710
  %v713 = vmul.u32 %v708, %v711
  %v714 = vmul.u32 %v709, %v710
  %v715 = vmul.u32 %v709, %v711
  %v716 = vshll.u32 %v713, 16
  %v717 = vshrl.u32 %v713, 16
  %v718 = vshll.u32 %v714, 16
  %v719 = vshrl.u32 %v714, 16
  %vm720 = vc.u32 %v712, %v716
  %v721 = vsel %vm720, 1, 0
  %v722 = vadd.s32 %v712, %v716
  %v723 = vadd.s32 %v715, %v721
  %vm724 = vc.u32 %v722, %v718
  %v725 = vsel %vm724, 1, 0
  %v726 = vadd.s32 %v722, %v718
  %v727 = vadd.s32 %v723, %v725
  %v728 = vadd.s32 %v727, %v717
  %v729 = vadd.s32 %v728, %v719
  %v730 = vmul.u32 %v685, %v676
  %v731 = vadd.s32 %v707, %v726
  %vm732 = vc.u32 %v707, %v726
  %v733 = vadd.s32 %v729, 1
  %v734 = vsel %vm732, %v733, %v729
  %v735 = vadd.s32 %v730, %v734
  %v736 = vadd.s32 %v735, 536870912
  %v737 = vshrl.u32 %v736, 30
  %v738 = vshll.u32 %v737, 30
  %v739 = vsub.s32 %v735, %v738
  %vm740 = vcmp.lt.s32.totalorder %v739, 0
  %v741 = vsub.s32 0, %v739
  %v742 = vsel %vm740, %v741, %v739
  %v743 = vclz %v742
  %v744 = vsub.s32 %v743, 2
  %vm745 = vcmp.gt.s32.totalorder 0, %v744
  %v746 = vsel %vm745, 0, %v744
  %v747 = vsub.s32 32, %v746
  %v748 = vshll.u32 %v739, %v746
  %v749 = vshrl.u32 %v731, %v747
  %v750 = vor.u32 %v748, %v749
  %v751 = vsub.s32 4294967266, %v746
  %v752 = vadd.s32 %v751, 127
  %v753 = vshll.u32 %v752, 23
  %v754 = vor.u32 4788187, %v753
  %v755 = vand.u32 2147483647, %v754
  %v757 = vcvt.s32.f32 %v750
  %v758 = vmul.f32 %v757, %v755
  %v759 = vxor.u32 %v758, 2147483648
  %v760 = vsel %vm639, %v759, %v758
  %v761 = vsub.s32 4, %v737
  %v762 = vsel %vm639, %v761, %v737
  %v763 = vsel %vm638, %v636, %v760
  %v764 = vsel %vm638, 0, %v762
  %v765 = vmul.f32 %v763, %v763
  %v766 = vmul.f32 %v765, -0.001358992
  %v767 = vadd.f32 %v766, 0.041655596
  %v768 = vmul.f32 %v765, %v767
  %v769 = vadd.f32 %v768, -0.4999988
  %v770 = vmul.f32 %v765, %v769
  %v771 = vadd.f32 1.0, %v770
  %v772 = vmul.f32 %v763, %v763
  %v773 = vmul.f32 %v772, -0.00019511016
  %v774 = vadd.f32 %v773, 0.008332121
  %v775 = vmul.f32 %v772, %v774
  %v776 = vadd.f32 %v775, -0.16666654
  %v777 = vmul.f32 %v772, %v776
  %v778 = vadd.f32 %v777, 1.0
  %v779 = vmul.f32 %v778, %v763
  %vm780 = vweird.f32 %v636
  %v781 = vadd.s32 %v764, 3
  %v782 = vand.u32 %v781, 3
  %vm783 = vcmp.lt.s32.totalorder %v782, 2
  %vm784 = vcmp.eq.s32.totalorder %v782, 0
  %v785 = vxor.u32 %v779, 2147483648
  %v786 = vsel %vm784, %v771, %v785
  %vm787 = vcmp.eq.s32.totalorder %v782, 2
  %v788 = vxor.u32 %v771, 2147483648
  %v789 = vsel %vm787, %v788, %v779
  %v790 = vsel %vm783, %v786, %v789
  %v791 = vsel %vm780, nan, %v790
  %v792 = vand.u32 2147483647, %v636
  %vm793 = vcmp.le.f32.partialorder %v792, 0.7853982
  %vm794 = vcmp.lt.s32.totalorder %v636, 0
  %v795 = vand.u32 %v636, 2139095040
  %v796 = vshrl.u32 %v795, 23
  %v797 = vsub.s32 %v796, 127
  %v798 = vand.u32 2147483647, %v636
  %v799 = vand.u32 %v798, 8388607
  %v800 = vor.u32 %v799, 8388608
  %v801 = vsub.s32 0, %v800
  %v802 = vadd.s32 %v797, 1
  %vm803 = vcmp.gt.s32.totalorder %v802, 0
  %v804 = vsel %vm803, %v802, 0
  %v805 = vshrl.u32 %v804, 5
  %v806 = vand.u32 %v804, 31
  %v807 = vsub.s32 32, %v806
  %v808 = vshrl.u32 683565275, %v807
  %v809 = vshll.u32 683565275, %v806
  %v810 = vshrl.u32 2475754826, %v807
  %v811 = vor.u32 %v809, %v810
  %v812 = vshll.u32 2475754826, %v806
  %v813 = vshrl.u32 2131351028, %v807
  %v814 = vor.u32 %v812, %v813
  %v815 = vshll.u32 2131351028, %v806
  %v816 = vshrl.u32 2102212464, %v807
  %v817 = vor.u32 %v815, %v816
  %v818 = vshll.u32 2102212464, %v806
  %v819 = vshrl.u32 920167782, %v807
  %v820 = vor.u32 %v818, %v819
  %v821 = vshll.u32 920167782, %v806
  %v822 = vshrl.u32 1326507024, %v807
  %v823 = vor.u32 %v821, %v822
  %vm824 = vcmp.lt.s32.totalorder %v805, 1
  %vm825 = vcmp.lt.s32.totalorder %v805, 2
  %vm826 = vcmp.lt.s32.totalorder %v805, 3
  %vm827 = vcmp.lt.s32.totalorder %v805, 4
  %v828 = vsel %vm824, %v808, %v811
  %v829 = vsel %vm827, %v817, 2102212464
  %v830 = vsel %vm826, %v814, %v829
  %v831 = vsel %vm825, %v828, %v830
  %v832 = vsel %vm824, %v811, %v814
  %v833 = vsel %vm827, %v820, 920167782
  %v834 = vsel %vm826, %v817, %v833
  %v835 = vsel %vm825, %v832, %v834
  %v836 = vsel %vm824, %v814, %v817
  %v837 = vsel %vm827, %v823, 1326507024
  %v838 = vsel %vm826, %v820, %v837
  %v839 = vsel %vm825, %v836, %v838
  %v840 = vshll.u32 %v800, 8
  %v841 = vand.u32 %v840, 65535
  %v842 = vshrl.u32 %v840, 16
  %v843 = vand.u32 %v839, 65535
  %v844 = vshrl.u32 %v839, 16
  %v845 = vmul.u32 %v841, %v843
  %v846 = vmul.u32 %v841, %v844
  %v847 = vmul.u32 %v842, %v843
  %v848 = vmul.u32 %v842, %v844
  %v849 = vshll.u32 %v846, 16
  %v850 = vshrl.u32 %v846, 16
  %v851 = vshll.u32 %v847, 16
  %v852 = vshrl.u32 %v847, 16
  %vm853 = vc.u32 %v845, %v849
  %v854 = vsel %vm853, 1, 0
  %v855 = vadd.s32 %v845, %v849
  %v856 = vadd.s32 %v848, %v854
  %vm857 = vc.u32 %v855, %v851
  %v858 = vsel %vm857, 1, 0
  %v859 = vadd.s32 %v855, %v851
  %v860 = vadd.s32 %v856, %v858
  %v861 = vadd.s32 %v860, %v850
  %v862 = vadd.s32 %v861, %v852
  %v863 = vand.u32 %v840, 65535
  %v864 = vshrl.u32 %v840, 16
  %v865 = vand.u32 %v835, 65535
  %v866 = vshrl.u32 %v835, 16
  %v867 = vmul.u32 %v863, %v865
  %v868 = vmul.u32 %v863, %v866
  %v869 = vmul.u32 %v864, %v865
  %v870 = vmul.u32 %v864, %v866
  %v871 = vshll.u32 %v868, 16
  %v872 = vshrl.u32 %v868, 16
  %v873 = vshll.u32 %v869, 16
  %v874 = vshrl.u32 %v869, 16
  %vm875 = vc.u32 %v867, %v871
  %v876 = vsel %vm875, 1, 0
  %v877 = vadd.s32 %v867, %v871
  %v878 = vadd.s32 %v870, %v876
  %vm879 = vc.u32 %v877, %v873
  %v880 = vsel %vm879, 1, 0
  %v881 = vadd.s32 %v877, %v873
  %v882 = vadd.s32 %v878, %v880
  %v883 = vadd.s32 %v882, %v872
  %v884 = vadd.s32 %v883, %v874
  %v885 = vmul.u32 %v840, %v831
  %v886 = vadd.s32 %v862, %v881
  %vm887 = vc.u32 %v862, %v881
  %v888 = vadd.s32 %v884, 1
  %v889 = vsel %vm887, %v888, %v884
  %v890 = vadd.s32 %v885, %v889
  %v891 = vadd.s32 %v890, 536870912
  %v892 = vshrl.u32 %v891, 30
  %v893 = vshll.u32 %v892, 30
  %v894 = vsub.s32 %v890, %v893
  %vm895 = vcmp.lt.s32.totalorder %v894, 0
  %v896 = vsub.s32 0, %v894
  %v897 = vsel %vm895, %v896, %v894
  %v898 = vclz %v897
  %v899 = vsub.s32 %v898, 2
  %vm900 = vcmp.gt.s32.totalorder 0, %v899
  %v901 = vsel %vm900, 0, %v899
  %v902 = vsub.s32 32, %v901
  %v903 = vshll.u32 %v894, %v901
  %v904 = vshrl.u32 %v886, %v902
  %v905 = vor.u32 %v903, %v904
  %v906 = vsub.s32 4294967266, %v901
  %v907 = vadd.s32 %v906, 127
  %v908 = vshll.u32 %v907, 23
  %v909 = vor.u32 4788187, %v908
  %v910 = vand.u32 2147483647, %v909
  %v912 = vcvt.s32.f32 %v905
  %v913 = vmul.f32 %v912, %v910
  %v914 = vxor.u32 %v913, 2147483648
  %v915 = vsel %vm794, %v914, %v913
  %v916 = vsub.s32 4, %v892
  %v917 = vsel %vm794, %v916, %v892
  %v918 = vsel %vm793, %v636, %v915
  %v919 = vsel %vm793, 0, %v917
  %v920 = vmul.f32 %v918, %v918
  %v921 = vmul.f32 %v920, -0.001358992
  %v922 = vadd.f32 %v921, 0.041655596
  %v923 = vmul.f32 %v920, %v922
  %v924 = vadd.f32 %v923, -0.4999988
  %v925 = vmul.f32 %v920, %v924
  %v926 = vadd.f32 1.0, %v925
  %v927 = vmul.f32 %v918, %v918
  %v928 = vmul.f32 %v927, -0.00019511016
  %v929 = vadd.f32 %v928, 0.008332121
  %v930 = vmul.f32 %v927, %v929
  %v931 = vadd.f32 %v930, -0.16666654
  %v932 = vmul.f32 %v927, %v931
  %v933 = vadd.f32 %v932, 1.0
  %v934 = vmul.f32 %v933, %v918
  %vm935 = vweird.f32 %v636
  %v936 = vand.u32 %v919, 3
  %vm937 = vcmp.lt.s32.totalorder %v936, 2
  %vm938 = vcmp.eq.s32.totalorder %v936, 0
  %v939 = vxor.u32 %v934, 2147483648
  %v940 = vsel %vm938, %v926, %v939
  %vm941 = vcmp.eq.s32.totalorder %v936, 2
  %v942 = vxor.u32 %v926, 2147483648
  %v943 = vsel %vm941, %v942, %v934
  %v944 = vsel %vm937, %v940, %v943
  %v945 = vsel %vm935, nan, %v944
  %v946 = vmul.f32 %v791, 2.0
  %v947 = vmul.f32 %v946, %v945
  %v948 = vmul.f32 %v946, %v791
  %v949 = vsub.f32 1.0, %v948
  %950 = vst [vmem:[%s1] sm:$0xff] %v8
  %s951 = scalar_lea.vmem %s1, 8
  %952 = vst [vmem:[%s951] sm:$0xff] %v163
  %s953 = scalar_lea.vmem %s1, 16
  %954 = vst [vmem:[%s953] sm:$0xff] %v317
  %s955 = scalar_lea.vmem %s1, 24
  %956 = vst [vmem:[%s955] sm:$0xff] %v319
  %s957 = scalar_lea.vmem %s1, 32
  %958 = vst [vmem:[%s957] sm:$0xff] %v321
  %s959 = scalar_lea.vmem %s1, 40
  %960 = vst [vmem:[%s959] sm:$0xff] %v477
  %s961 = scalar_lea.vmem %s1, 48
  %962 = vst [vmem:[%s961] sm:$0xff] %v631
  %s963 = scalar_lea.vmem %s1, 56
  %964 = vst [vmem:[%s963] sm:$0xff] %v633
  %s965 = scalar_lea.vmem %s1, 64
  %966 = vst [vmem:[%s965] sm:$0xff] %v635
  %s967 = scalar_lea.vmem %s1, 72
  %968 = vst [vmem:[%s967] sm:$0xff] %v791
  %s969 = scalar_lea.vmem %s1, 80
  %970 = vst [vmem:[%s969] sm:$0xff] %v945
  %s971 = scalar_lea.vmem %s1, 88
  %972 = vst [vmem:[%s971] sm:$0xff] %v947
  %s973 = scalar_lea.vmem %s1, 96
  %974 = vst [vmem:[%s973] sm:$0xff] %v949
  // Predicated region
  $region6: #{positional_encoding.1} parent=0 // pred_check
    _
  $region7: #{positional_encoding.1} parent=0 // pred_check_branch
    %976 = sbr.rel (0) target = $region9
  $region8: #{positional_encoding.1} parent=0 // pred_region
    _
  $region9: #{positional_encoding.1} parent=0 // pred_fallthru
    _
  // Predicated region
  $region10: #{positional_encoding.1} parent=0 // pred_check
    _
  $region11: #{positional_encoding.1} parent=0 // pred_check_branch
    %978 = sbr.rel (0) target = $region13
  $region12: #{positional_encoding.1} parent=0 // pred_region
    _
  $region13: #{positional_encoding.1} parent=0 // pred_fallthru
    _

</llo_original>
